<compile_context>
chip_gen: v7x
topology: tpu7x:2x2x1
jax: 0.10.0
libtpu: 0.0.40
codegen_flags: <defaults>
</compile_context>

<pallas_src>
import functools

import jax
import jax.numpy as jnp
from jax.experimental import pallas as pl
from jax.experimental.pallas import tpu as pltpu


LANE = 128


# ------------------------------- helpers ------------------------------------

def _round_up(x, m):
    return ((x + m - 1) // m) * m


def _batch_tiling(batch):
    """Return (padded_batch, batch_tile).

    Large tiles amortize the ~0.35us per-grid-step overhead; when the batch is
    big enough we keep at least two tiles so the "parallel" batch axis can
    shard across v7x's two TensorCores (v5e/v6e have one TC, no harm there).
    """
    bp = _round_up(max(int(batch), 1), 8)
    if bp <= 8:
        return bp, bp
    tb = min(1024, _round_up((bp + 1) // 2, 8))
    bp = _round_up(bp, tb)
    return bp, tb


# ----------------------------- fused kernel ---------------------------------

def _fused_mlp_kernel(*refs, n_layers, y_range):
    """(Linear+ReLU) * (n_layers-1) -> Linear -> optional sigmoid/y_range.

    refs = (x, w_aug_0, ..., w_aug_{n_layers-1}, o)

    Biases (and inference BatchNorm) are pre-folded into the augmented weights:
    each weight carries its bias in the "ones-lane" row and plants a 1.0 in a
    pad lane of its output so the next layer's bias row is fed.  All
    intermediates stay in vregs/VMEM.
    """
    x_ref = refs[0]
    o_ref = refs[-1]
    w_refs = refs[1:-1]

    # bf16 matmul operands, f32 accumulation (MXU friendly on v5e/v6e/v7x).
    h = x_ref[...].astype(w_refs[0].dtype)
    for i in range(n_layers - 1):
        y = jnp.dot(h, w_refs[i][...], preferred_element_type=jnp.float32)
        # Bias already applied via the ones-lane row; ReLU preserves the
        # propagated 1.0 (pad lane) for the next layer's bias row.
        h = jnp.maximum(y, 0.0).astype(w_refs[i].dtype)
    y = jnp.dot(h, w_refs[n_layers - 1][...], preferred_element_type=jnp.float32)

    if y_range is not None:
        lo, hi = y_range
        # sigmoid expressed as exp + approx reciprocal: both run on the EUP
        # slot, free alongside the matmuls.
        y = (hi - lo) * pl.reciprocal(1.0 + jnp.exp(-y), approx=True) + lo

    o_ref[...] = y.astype(o_ref.dtype)


def fused_mlp(x, weights, *, tb, y_range=None, out_dtype=jnp.float32):
    """x: [Bp, K0+1] (ones column appended, Bp % tb == 0, natural feature dim).
    weights[i]: bias-folded augmented weight [Ka_i, Np_i] (bf16)."""
    bp, k0 = x.shape
    assert bp % tb == 0
    n_layers = len(weights)
    np_out = int(weights[-1].shape[1])
    grid = (bp // tb,)

    kernel = functools.partial(_fused_mlp_kernel,
                               n_layers=n_layers, y_range=y_range)

    # Advisory cost estimate so XLA overlaps the surrounding gather/concat ops.
    w_bytes = sum(int(w.size) * w.dtype.itemsize for w in weights)
    flops = 2 * bp * sum(int(w.shape[0]) * int(w.shape[1]) for w in weights)
    transcendentals = bp * np_out if y_range is not None else 0
    bytes_accessed = (int(x.size) * x.dtype.itemsize
                      + bp * np_out * jnp.dtype(out_dtype).itemsize
                      + w_bytes)
    cost = pl.CostEstimate(flops=int(flops),
                           transcendentals=int(transcendentals),
                           bytes_accessed=int(bytes_accessed))

    # Explicit VMEM headroom (double-buffered x/out, weights, activations) so
    # the same tiling survives v7x's 64 MiB (32 MiB scoped default) VMEM.
    max_np = max(int(w.shape[1]) for w in weights)
    vmem_est = (2 * tb * k0 * 4 + 2 * tb * np_out * 4
                + 2 * w_bytes + 4 * tb * max_np * 4)
    vmem_limit = int(min(100 * 2 ** 20, max(32 * 2 ** 20, 4 * vmem_est)))

    def build(single_buffer_weights):
        in_specs = [pl.BlockSpec((tb, k0), lambda i: (i, 0))]
        for w in weights:
            if single_buffer_weights:
                # Grid-invariant operands: single-buffer to save VMEM and
                # per-step pipeline bookkeeping.
                spec = pl.BlockSpec(tuple(w.shape), lambda i: (0, 0),
                                    pipeline_mode=pl.Buffered(1))
            else:
                spec = pl.BlockSpec(tuple(w.shape), lambda i: (0, 0))
            in_specs.append(spec)
        return pl.pallas_call(
            kernel,
            out_shape=jax.ShapeDtypeStruct((bp, np_out), out_dtype),
            grid=grid,
            in_specs=in_specs,
            out_specs=pl.BlockSpec((tb, np_out), lambda i: (i, 0)),
            compiler_params=pltpu.CompilerParams(
                dimension_semantics=("parallel",),
                vmem_limit_bytes=vmem_limit),
            cost_estimate=cost,
        )

    try:
        return build(True)(x, *weights)
    except Exception:
        # Fallback if single-buffered pipeline_mode is rejected on this jax.
        return build(False)(x, *weights)


# --------------------------- parameter creation ------------------------------

def init_params(key, embedding_sizes, n_continuous, hidden_sizes, output_sizes):
    """Raw parameters matching the PyTorch module's init distributions.
    Linear weights stored as [in_features, out_features]."""
    n_layers = len(hidden_sizes) + 1
    n_keys = len(embedding_sizes) + 2 * n_layers
    kiter = iter(jax.random.split(key, max(n_keys, 2)))
    params = {}

    # Embeddings: uniform(-sc, sc), sc = 2 / (emb_dim + 1)   (emb_init)
    emb_tables = []
    for (c, s) in embedding_sizes:
        sc = 2.0 / (s + 1)
        emb_tables.append(
            jax.random.uniform(next(kiter), (c, s), jnp.float32, -sc, sc))
    params["emb"] = emb_tables

    n_emb = sum(s for _, s in embedding_sizes)
    sizes = [n_emb + n_continuous] + list(hidden_sizes)

    # Hidden linears: kaiming-normal weight (std=sqrt(2/fan_in)), default bias.
    linears = []
    for i in range(len(sizes) - 1):
        fan_in, fan_out = sizes[i], sizes[i + 1]
        w = jax.random.normal(next(kiter), (fan_in, fan_out), jnp.float32)
        w = w * jnp.sqrt(2.0 / fan_in)
        bound = 1.0 / float(fan_in) ** 0.5
        b = jax.random.uniform(next(kiter), (fan_out,), jnp.float32, -bound, bound)
        linears.append((w, b))
    params["linears"] = linears

    # Output linear.
    fan_in = sizes[-1]
    w = jax.random.normal(next(kiter), (fan_in, output_sizes), jnp.float32)
    w = w * jnp.sqrt(2.0 / fan_in)
    bound = 1.0 / float(fan_in) ** 0.5
    b = jax.random.uniform(next(kiter), (output_sizes,), jnp.float32, -bound, bound)
    params["outp"] = (w, b)

    # BatchNorm params (inference: gamma, beta, running_mean, running_var).
    params["bn_cont"] = (jnp.ones(n_continuous, jnp.float32),
                         jnp.zeros(n_continuous, jnp.float32),
                         jnp.zeros(n_continuous, jnp.float32),
                         jnp.ones(n_continuous, jnp.float32))
    params["bn_hidden"] = [
        (jnp.ones(s, jnp.float32), jnp.zeros(s, jnp.float32),
         jnp.zeros(s, jnp.float32), jnp.ones(s, jnp.float32))
        for s in sizes[1:]
    ]
    return params


def prepare_fused_params(params, embedding_sizes, n_continuous, *,
                         use_bn=False, eps=1e-5, compute_dtype=jnp.bfloat16):
    """Fold inference BatchNorm and all biases into augmented, lane-padded
    weights.  Returns weights[list of [Ka_i, Np_i]] in `compute_dtype`.

    Augmentation scheme: layer input row `K_i` is the "ones lane" (fed by the
    ones column of x for layer 0, or by the 1.0 planted in a pad lane of the
    previous layer's output).  Row K_i of the augmented weight holds the bias,
    and (for non-final layers) a 1.0 at output lane N_i to continue the chain.
    """
    n_emb = sum(s for _, s in embedding_sizes)
    del n_continuous  # implied by the layer-0 weight shape

    # ---- fold bn(x_cont) into layer 0 (cont features are the trailing rows);
    # ---- the reference forward applies this BN unconditionally.
    w0, b0 = params["linears"][0]
    g, beta, mu, var = params["bn_cont"]
    s = g * jax.lax.rsqrt(var + eps)
    t = beta - mu * s
    wc = w0[n_emb:, :]
    w0 = jnp.concatenate([w0[:n_emb, :], wc * s[:, None]], axis=0)
    b0 = b0 + t @ wc

    linears = [(w0, b0)] + [tuple(lb) for lb in params["linears"][1:]]
    outp = tuple(params["outp"])

    # ---- if use_bn, fold each hidden BN (applied after ReLU) into the NEXT
    # ---- linear: x_bn @ W = x @ (s*W) + (t @ W).
    if use_bn:
        for i in range(len(linears)):
            g, beta, mu, var = params["bn_hidden"][i]
            s = g * jax.lax.rsqrt(var + eps)
            t = beta - mu * s
            if i + 1 < len(linears):
                wn, bn_ = linears[i + 1]
                linears[i + 1] = (wn * s[:, None], bn_ + t @ wn)
            else:
                wn, bn_ = outp
                outp = (wn * s[:, None], bn_ + t @ wn)

    # ---- build augmented, bias-folded, lane-padded weights (once, at prep) --
    layers = linears + [outp]
    n_layers = len(layers)
    weights = []
    prev_np = None
    for j, (w, b) in enumerate(layers):
        k, n = w.shape
        ka = k + 1 if j == 0 else prev_np          # augmented input width
        last = (j == n_layers - 1)
        np_ = _round_up(n, LANE) if last else _round_up(n + 1, LANE)
        wa = jnp.zeros((ka, np_), jnp.float32)
        wa = wa.at[:k, :n].set(w)
        wa = wa.at[k, :n].set(b)                   # bias in the ones-lane row
        if not last:
            wa = wa.at[k, n].set(1.0)              # propagate the ones lane
        weights.append(wa.astype(compute_dtype))
        prev_np = np_
    return weights


# ------------------------------ forward pass ---------------------------------

def mixed_input_forward(weights, emb_tables, x_cat, x_cont, *,
                        output_sizes, y_range=None):
    # Embedding gathers + concat stay in XLA (tiny, data-dependent row gather);
    # everything from the first matmul onward runs in one fused Pallas kernel.
    # TODO(synk): for latency-critical tiny-batch serving, fuse the gather too
    # (x_cat via PrefetchScalarGridSpec into SMEM, tables resident in VMEM).
    batch = x_cat.shape[0]
    embs = [tbl[x_cat[:, i]] for i, tbl in enumerate(emb_tables)]
    # emb_drop / hidden dropouts: identity at inference.
    # Ones column rides along in the concat that already exists -- it feeds the
    # bias rows folded into the augmented weights (no extra HBM materialize).
    ones = jnp.ones((batch, 1), jnp.float32)
    x = jnp.concatenate(embs + [x_cont, ones], axis=1)   # [B, K0+1], natural K

    bp, tb = _batch_tiling(batch)
    if bp != batch:
        x = jnp.pad(x, ((0, bp - batch), (0, 0)))         # batch pad only

    out = fused_mlp(x, weights, tb=tb, y_range=y_range)
    return out[:batch, :output_sizes]


# ------------------------- pure-JAX reference (f32) --------------------------

def reference_forward(params, x_cat, x_cont, *, use_bn=False, y_range=None,
                      eps=1e-5):
    embs = [tbl[x_cat[:, i]] for i, tbl in enumerate(params["emb"])]
    x1 = jnp.concatenate(embs, axis=1)
    g, beta, mu, var = params["bn_cont"]
    x2 = (x_cont - mu) * jax.lax.rsqrt(var + eps) * g + beta
    x = jnp.concatenate([x1, x2], axis=1)
    for i, (w, b) in enumerate(params["linears"]):
        x = jnp.maximum(x @ w + b, 0.0)
        if use_bn:
            g, beta, mu, var = params["bn_hidden"][i]
            x = (x - mu) * jax.lax.rsqrt(var + eps) * g + beta
    w, b = params["outp"]
    x = x @ w + b
    if y_range is not None:
        x = jax.nn.sigmoid(x) * (y_range[1] - y_range[0]) + y_range[0]
    return x


# ----------------------------------- main ------------------------------------

if __name__ == "__main__":
    key = jax.random.PRNGKey(0)
    k_params, k_cat, k_cont = jax.random.split(key, 3)

    # Small config consistent with the module's __init__.
    embedding_sizes = [(10, 4), (8, 3)]   # (cardinality, emb_dim)
    n_continuous = 5
    hidden_sizes = [32, 16]
    output_sizes = 1
    batch = 8

    params = init_params(k_params, embedding_sizes, n_continuous,
                         hidden_sizes, output_sizes)

    x_cat = jnp.stack(
        [jax.random.randint(jax.random.fold_in(k_cat, i), (batch,), 0, c)
         for i, (c, _) in enumerate(embedding_sizes)],
        axis=1).astype(jnp.int32)                          # [batch, n_cat]
    x_cont = jax.random.normal(k_cont, (batch, n_continuous), jnp.float32)

    for use_bn, y_range in ((False, (0.0, 5.0)), (True, None)):
        weights = prepare_fused_params(params, embedding_sizes, n_continuous,
                                       use_bn=use_bn)
        out = mixed_input_forward(weights, params["emb"], x_cat, x_cont,
                                  output_sizes=output_sizes, y_range=y_range)
        out = jax.block_until_ready(out)
        ref = reference_forward(params, x_cat, x_cont,
                                use_bn=use_bn, y_range=y_range)

        assert out.shape == (batch, output_sizes)
        assert bool(jnp.all(jnp.isfinite(out)))
        # bf16 matmul operands vs f32 reference -> loose-but-meaningful bound.
        assert bool(jnp.allclose(out, ref, atol=1.5e-1, rtol=1e-1)), (out, ref)

    print("KERNEL_OK")
</pallas_src>

<mosaic_0001>
module attributes {stable_mosaic.version = 11 : i64} {
  func.func @_fused_mlp_kernel(%arg0: i32, %arg1: memref<8x13xf32, #tpu.memory_space<vmem>>, %arg2: memref<13x128xbf16, #tpu.memory_space<vmem>>, %arg3: memref<128x128xbf16, #tpu.memory_space<vmem>>, %arg4: memref<128x128xbf16, #tpu.memory_space<vmem>>, %arg5: memref<8x128xf32, #tpu.memory_space<vmem>>) attributes {dimension_semantics = [#tpu.dimension_semantics<parallel>], iteration_bounds = array<i64: 1>, scalar_prefetch = 0 : i64, scratch_operands = 0 : i64, tpu.core_type = #tpu.core_type<tc>, window_params = [{transform_indices = @transform_0, window_bounds = array<i64: 8, 13>}, {pipeline_mode = #tpu.pipeline_mode<synchronous>, transform_indices = @transform_1, window_bounds = array<i64: 13, 128>}, {pipeline_mode = #tpu.pipeline_mode<synchronous>, transform_indices = @transform_2, window_bounds = array<i64: 128, 128>}, {pipeline_mode = #tpu.pipeline_mode<synchronous>, transform_indices = @transform_3, window_bounds = array<i64: 128, 128>}, {transform_indices = @transform_4, window_bounds = array<i64: 8, 128>}]} {
    %c0 = arith.constant 0 : index
    %c0_0 = arith.constant 0 : index
    %0 = vector.load %arg1[%c0, %c0_0] : memref<8x13xf32, #tpu.memory_space<vmem>>, vector<8x13xf32>
    %1 = arith.truncf %0 : vector<8x13xf32> to vector<8x13xbf16>
    %c0_1 = arith.constant 0 : index
    %c0_2 = arith.constant 0 : index
    %2 = vector.load %arg2[%c0_1, %c0_2] : memref<13x128xbf16, #tpu.memory_space<vmem>>, vector<13x128xbf16>
    %cst = arith.constant dense<0.000000e+00> : vector<8x128xf32>
    %3 = tpu.matmul %1, %2, %cst {dimension_numbers = #tpu.dot_dimension_numbers<[1], [0], [0], [1], [0, 0, 1, 1], [], []>} : vector<8x13xbf16>, vector<13x128xbf16>, vector<8x128xf32> -> vector<8x128xf32>
    %cst_3 = arith.constant 0.000000e+00 : f32
    %4 = vector.broadcast %cst_3 : f32 to vector<8x128xf32>
    %5 = arith.maximumf %3, %4 : vector<8x128xf32>
    %6 = arith.truncf %5 : vector<8x128xf32> to vector<8x128xbf16>
    %c0_4 = arith.constant 0 : index
    %c0_5 = arith.constant 0 : index
    %7 = vector.load %arg3[%c0_4, %c0_5] : memref<128x128xbf16, #tpu.memory_space<vmem>>, vector<128x128xbf16>
    %cst_6 = arith.constant dense<0.000000e+00> : vector<8x128xf32>
    %8 = tpu.matmul %6, %7, %cst_6 {dimension_numbers = #tpu.dot_dimension_numbers<[1], [0], [0], [1], [0, 0, 1, 1], [], []>} : vector<8x128xbf16>, vector<128x128xbf16>, vector<8x128xf32> -> vector<8x128xf32>
    %cst_7 = arith.constant 0.000000e+00 : f32
    %9 = vector.broadcast %cst_7 : f32 to vector<8x128xf32>
    %10 = arith.maximumf %8, %9 : vector<8x128xf32>
    %11 = arith.truncf %10 : vector<8x128xf32> to vector<8x128xbf16>
    %c0_8 = arith.constant 0 : index
    %c0_9 = arith.constant 0 : index
    %12 = vector.load %arg4[%c0_8, %c0_9] : memref<128x128xbf16, #tpu.memory_space<vmem>>, vector<128x128xbf16>
    %cst_10 = arith.constant dense<0.000000e+00> : vector<8x128xf32>
    %13 = tpu.matmul %11, %12, %cst_10 {dimension_numbers = #tpu.dot_dimension_numbers<[1], [0], [0], [1], [0, 0, 1, 1], [], []>} : vector<8x128xbf16>, vector<128x128xbf16>, vector<8x128xf32> -> vector<8x128xf32>
    %cst_11 = arith.constant 0.000000e+00 : f32
    %14 = vector.broadcast %cst_11 : f32 to vector<8x128xf32>
    %15 = arith.subf %14, %13 : vector<8x128xf32>
    %16 = math.exp %15 : vector<8x128xf32>
    %cst_12 = arith.constant 1.000000e+00 : f32
    %17 = vector.broadcast %cst_12 : f32 to vector<8x128xf32>
    %18 = arith.addf %17, %16 : vector<8x128xf32>
    %19 = tpu.reciprocal %18 {approx = true} : vector<8x128xf32> -> vector<8x128xf32>
    %cst_13 = arith.constant 5.000000e+00 : f32
    %20 = vector.broadcast %cst_13 : f32 to vector<8x128xf32>
    %21 = arith.mulf %20, %19 : vector<8x128xf32>
    %cst_14 = arith.constant 0.000000e+00 : f32
    %22 = vector.broadcast %cst_14 : f32 to vector<8x128xf32>
    %23 = arith.addf %21, %22 : vector<8x128xf32>
    %c0_15 = arith.constant 0 : index
    %c0_16 = arith.constant 0 : index
    %24 = vector.load %arg5[%c0_15, %c0_16] : memref<8x128xf32, #tpu.memory_space<vmem>>, vector<8x128xf32>
    tpu.vector_store %arg5[%c0_15, %c0_16], %23 {strides = array<i32>} : memref<8x128xf32, #tpu.memory_space<vmem>>, vector<8x128xf32>,
    return
  }
  func.func @transform_0(%arg0: i32) -> (i32, i32) {
    %c0_i32 = arith.constant 0 : i32
    %c0_i32_0 = arith.constant 0 : i32
    return %arg0, %c0_i32 : i32, i32
  }
  func.func @transform_1(%arg0: i32) -> (i32, i32) {
    %c0_i32 = arith.constant 0 : i32
    %c0_i32_0 = arith.constant 0 : i32
    %c0_i32_1 = arith.constant 0 : i32
    return %c0_i32, %c0_i32_0 : i32, i32
  }
  func.func @transform_2(%arg0: i32) -> (i32, i32) {
    %c0_i32 = arith.constant 0 : i32
    %c0_i32_0 = arith.constant 0 : i32
    %c0_i32_1 = arith.constant 0 : i32
    return %c0_i32, %c0_i32_0 : i32, i32
  }
  func.func @transform_3(%arg0: i32) -> (i32, i32) {
    %c0_i32 = arith.constant 0 : i32
    %c0_i32_0 = arith.constant 0 : i32
    %c0_i32_1 = arith.constant 0 : i32
    return %c0_i32, %c0_i32_0 : i32, i32
  }
  func.func @transform_4(%arg0: i32) -> (i32, i32) {
    %c0_i32 = arith.constant 0 : i32
    %c0_i32_0 = arith.constant 0 : i32
    return %arg0, %c0_i32 : i32, i32
  }
}

module attributes {stable_mosaic.version = 11 : i64} {
  func.func @_fused_mlp_kernel(%arg0: i32, %arg1: memref<8x13xf32, #tpu.memory_space<vmem>>, %arg2: memref<13x128xbf16, #tpu.memory_space<vmem>>, %arg3: memref<128x128xbf16, #tpu.memory_space<vmem>>, %arg4: memref<128x128xbf16, #tpu.memory_space<vmem>>, %arg5: memref<8x128xf32, #tpu.memory_space<vmem>>) attributes {dimension_semantics = [#tpu.dimension_semantics<parallel>], iteration_bounds = array<i64: 1>, scalar_prefetch = 0 : i64, scratch_operands = 0 : i64, tpu.core_type = #tpu.core_type<tc>, window_params = [{transform_indices = @transform_0, window_bounds = array<i64: 8, 13>}, {pipeline_mode = #tpu.pipeline_mode<synchronous>, transform_indices = @transform_1, window_bounds = array<i64: 13, 128>}, {pipeline_mode = #tpu.pipeline_mode<synchronous>, transform_indices = @transform_2, window_bounds = array<i64: 128, 128>}, {pipeline_mode = #tpu.pipeline_mode<synchronous>, transform_indices = @transform_3, window_bounds = array<i64: 128, 128>}, {transform_indices = @transform_4, window_bounds = array<i64: 8, 128>}]} {
    %c0 = arith.constant 0 : index
    %c0_0 = arith.constant 0 : index
    %0 = vector.load %arg1[%c0, %c0_0] : memref<8x13xf32, #tpu.memory_space<vmem>>, vector<8x13xf32>
    %1 = arith.truncf %0 : vector<8x13xf32> to vector<8x13xbf16>
    %c0_1 = arith.constant 0 : index
    %c0_2 = arith.constant 0 : index
    %2 = vector.load %arg2[%c0_1, %c0_2] : memref<13x128xbf16, #tpu.memory_space<vmem>>, vector<13x128xbf16>
    %cst = arith.constant dense<0.000000e+00> : vector<8x128xf32>
    %3 = tpu.matmul %1, %2, %cst {dimension_numbers = #tpu.dot_dimension_numbers<[1], [0], [0], [1], [0, 0, 1, 1], [], []>} : vector<8x13xbf16>, vector<13x128xbf16>, vector<8x128xf32> -> vector<8x128xf32>
    %cst_3 = arith.constant 0.000000e+00 : f32
    %4 = vector.broadcast %cst_3 : f32 to vector<8x128xf32>
    %5 = arith.maximumf %3, %4 : vector<8x128xf32>
    %6 = arith.truncf %5 : vector<8x128xf32> to vector<8x128xbf16>
    %c0_4 = arith.constant 0 : index
    %c0_5 = arith.constant 0 : index
    %7 = vector.load %arg3[%c0_4, %c0_5] : memref<128x128xbf16, #tpu.memory_space<vmem>>, vector<128x128xbf16>
    %cst_6 = arith.constant dense<0.000000e+00> : vector<8x128xf32>
    %8 = tpu.matmul %6, %7, %cst_6 {dimension_numbers = #tpu.dot_dimension_numbers<[1], [0], [0], [1], [0, 0, 1, 1], [], []>} : vector<8x128xbf16>, vector<128x128xbf16>, vector<8x128xf32> -> vector<8x128xf32>
    %cst_7 = arith.constant 0.000000e+00 : f32
    %9 = vector.broadcast %cst_7 : f32 to vector<8x128xf32>
    %10 = arith.maximumf %8, %9 : vector<8x128xf32>
    %11 = arith.truncf %10 : vector<8x128xf32> to vector<8x128xbf16>
    %c0_8 = arith.constant 0 : index
    %c0_9 = arith.constant 0 : index
    %12 = vector.load %arg4[%c0_8, %c0_9] : memref<128x128xbf16, #tpu.memory_space<vmem>>, vector<128x128xbf16>
    %cst_10 = arith.constant dense<0.000000e+00> : vector<8x128xf32>
    %13 = tpu.matmul %11, %12, %cst_10 {dimension_numbers = #tpu.dot_dimension_numbers<[1], [0], [0], [1], [0, 0, 1, 1], [], []>} : vector<8x128xbf16>, vector<128x128xbf16>, vector<8x128xf32> -> vector<8x128xf32>
    %cst_11 = arith.constant 0.000000e+00 : f32
    %14 = vector.broadcast %cst_11 : f32 to vector<8x128xf32>
    %15 = arith.subf %14, %13 : vector<8x128xf32>
    %16 = math.exp %15 : vector<8x128xf32>
    %cst_12 = arith.constant 1.000000e+00 : f32
    %17 = vector.broadcast %cst_12 : f32 to vector<8x128xf32>
    %18 = arith.addf %17, %16 : vector<8x128xf32>
    %19 = tpu.reciprocal %18 {approx = true} : vector<8x128xf32> -> vector<8x128xf32>
    %cst_13 = arith.constant 5.000000e+00 : f32
    %20 = vector.broadcast %cst_13 : f32 to vector<8x128xf32>
    %21 = arith.mulf %20, %19 : vector<8x128xf32>
    %cst_14 = arith.constant 0.000000e+00 : f32
    %22 = vector.broadcast %cst_14 : f32 to vector<8x128xf32>
    %23 = arith.addf %21, %22 : vector<8x128xf32>
    %c0_15 = arith.constant 0 : index
    %c0_16 = arith.constant 0 : index
    %24 = vector.load %arg5[%c0_15, %c0_16] : memref<8x128xf32, #tpu.memory_space<vmem>>, vector<8x128xf32>
    tpu.vector_store %arg5[%c0_15, %c0_16], %23 {strides = array<i32>} : memref<8x128xf32, #tpu.memory_space<vmem>>, vector<8x128xf32>,
    return
  }
  func.func @transform_0(%arg0: i32) -> (i32, i32) {
    %c0_i32 = arith.constant 0 : i32
    %c0_i32_0 = arith.constant 0 : i32
    return %arg0, %c0_i32 : i32, i32
  }
  func.func @transform_1(%arg0: i32) -> (i32, i32) {
    %c0_i32 = arith.constant 0 : i32
    %c0_i32_0 = arith.constant 0 : i32
    %c0_i32_1 = arith.constant 0 : i32
    return %c0_i32, %c0_i32_0 : i32, i32
  }
  func.func @transform_2(%arg0: i32) -> (i32, i32) {
    %c0_i32 = arith.constant 0 : i32
    %c0_i32_0 = arith.constant 0 : i32
    %c0_i32_1 = arith.constant 0 : i32
    return %c0_i32, %c0_i32_0 : i32, i32
  }
  func.func @transform_3(%arg0: i32) -> (i32, i32) {
    %c0_i32 = arith.constant 0 : i32
    %c0_i32_0 = arith.constant 0 : i32
    %c0_i32_1 = arith.constant 0 : i32
    return %c0_i32, %c0_i32_0 : i32, i32
  }
  func.func @transform_4(%arg0: i32) -> (i32, i32) {
    %c0_i32 = arith.constant 0 : i32
    %c0_i32_0 = arith.constant 0 : i32
    return %arg0, %c0_i32 : i32, i32
  }
}

</mosaic_0001>

<llo_original>
// kernel: tpu_custom_call.1
$region0: #{tpu_custom_call.1}
  #allocation0 [shape = 'u32[]', space=smem, size = 0x4, offset = 0x4, fixed_abs, tag = 'smem constant byte address 0x4 - core index']
  #allocation1 [shape = 'u32[144,128]{1,0:T(1,128)}', space=vmem, size = 0x12000, scoped, tag = 'internal scratch']
  %s0 = inlined_call_operand.hbm [shape: f32[8,13], index: 0, kind: input, shape index: {}]
  %s1 = inlined_call_operand.hbm [shape: bf16[13,128], index: 1, kind: input, shape index: {}]
  %s2 = inlined_call_operand.hbm [shape: bf16[128,128], index: 2, kind: input, shape index: {}]
  %s3 = inlined_call_operand.hbm [shape: bf16[128,128], index: 3, kind: input, shape index: {}]
  %s4 = inlined_call_operand.hbm [shape: f32[8,128], index: 4, kind: output, shape index: {}]
  %s5 = sld [smem:[#allocation0]]
  $region42: #{tpu_custom_call.1} parent=0
    _
  %s7 = ssub.s32 1, %s5
  %s8 = scalar_select 0, %s7, %s5
  $region1: #{tpu_custom_call.1} parent=0
    #allocation2 [shape = 'u8[4096]{0}', space=vmem, size = 0x1000, scoped, tag = 'input window, operand 0, single buffered']
    #allocation3 [shape = 's32[1]{0}', space=sflag, size = 0x4, scoped, tag = 'scoped memory for tpu_custom_call.1']
    #allocation4 [shape = 's32[1]{0}', space=sflag, size = 0x4, scoped, tag = 'scoped memory for tpu_custom_call.1']
    #allocation5 [shape = 'u8[4096]{0}', space=vmem, size = 0x1000, scoped, tag = 'input window, operand 1, single buffered']
    #allocation6 [shape = 's32[1]{0}', space=sflag, size = 0x4, scoped, tag = 'scoped memory for tpu_custom_call.1']
    #allocation7 [shape = 'u8[32768]{0}', space=vmem, size = 0x8000, scoped, tag = 'input window, operand 2, single buffered']
    #allocation8 [shape = 'u8[32768]{0}', space=vmem, size = 0x8000, scoped, tag = 'input window, operand 3, single buffered']
    #allocation9 [shape = 's32[1]{0}', space=sflag, size = 0x4, scoped, tag = 'scoped memory for tpu_custom_call.1']
    #allocation10 [shape = 'u8[4096]{0}', space=vmem, size = 0x1000, scoped, tag = 'output window, operand 0, single buffered']
    %9 = vsyncpa [#allocation3], 0
    %10 = vsyncpa [#allocation6], 0
    %11 = vsyncpa [#allocation9], 0
    %12 = vsyncpa [#allocation4], 0
    // Predicated region
    $region2: #{tpu_custom_call.1} parent=1 // pred_check
      _
    $region3: #{tpu_custom_call.1} parent=1 // pred_check_branch
      %14 = sbr.rel (0) target = $region5
    $region4: #{tpu_custom_call.1} parent=1 // pred_region
      %s16 = ssub.s32 128, 128
      %17 = vsyncadd [#allocation3], %s16
      %s19 = sshll.u32 [#allocation2], 4
      %s20 = int_to_ptr.vmem [resolvable:$true] %s19
      %22 = dma.hbm_to_vmem [thread:$0]  %s0, 128, %s20, [#allocation3]
    $region5: #{tpu_custom_call.1} parent=1 // pred_fallthru
      _
    // Predicated region
    $region6: #{tpu_custom_call.1} parent=1 // pred_check
      _
    $region7: #{tpu_custom_call.1} parent=1 // pred_check_branch
      %24 = sbr.rel (0) target = $region9
    $region8: #{tpu_custom_call.1} parent=1 // pred_region
      %s26 = ssub.s32 128, 128
      %27 = vsyncadd [#allocation6], %s26
      %s28 = sshll.u32 [#allocation5], 4
      %s29 = int_to_ptr.vmem [resolvable:$true] %s28
      %34 = dma.hbm_to_vmem [thread:$0]  %s1, 128, %s29, [#allocation6], 64, 64, 4
    $region9: #{tpu_custom_call.1} parent=1 // pred_fallthru
      _
    // Predicated region
    $region10: #{tpu_custom_call.1} parent=1 // pred_check
      _
    $region11: #{tpu_custom_call.1} parent=1 // pred_check_branch
      %36 = sbr.rel (0) target = $region13
    $region12: #{tpu_custom_call.1} parent=1 // pred_region
      %s38 = ssub.s32 1024, 1024
      %39 = vsyncadd [#allocation6], %s38
      %s40 = sshll.u32 [#allocation7], 4
      %s41 = int_to_ptr.vmem [resolvable:$true] %s40
      %46 = dma.hbm_to_vmem [thread:$0]  %s2, 1024, %s41, [#allocation6], 64, 64, 4
    $region13: #{tpu_custom_call.1} parent=1 // pred_fallthru
      _
    // Predicated region
    $region14: #{tpu_custom_call.1} parent=1 // pred_check
      _
    $region15: #{tpu_custom_call.1} parent=1 // pred_check_branch
      %48 = sbr.rel (0) target = $region17
    $region16: #{tpu_custom_call.1} parent=1 // pred_region
      %s50 = ssub.s32 1024, 1024
      %51 = vsyncadd [#allocation9], %s50
      %s52 = sshll.u32 [#allocation8], 4
      %s53 = int_to_ptr.vmem [resolvable:$true] %s52
      %58 = dma.hbm_to_vmem [thread:$0]  %s3, 1024, %s53, [#allocation9], 64, 64, 4
    $region17: #{tpu_custom_call.1} parent=1 // pred_fallthru
      _
    // Predicated region
    $region18: #{tpu_custom_call.1} parent=1 // pred_check
      _
    $region19: #{tpu_custom_call.1} parent=1 // pred_check_branch
      %60 = sbr.rel (0) target = $region21
    $region20: #{tpu_custom_call.1} parent=1 // pred_region
      %61 = dma.done [#allocation3], 128
    $region21: #{tpu_custom_call.1} parent=1 // pred_fallthru
      _
    // Predicated region
    $region22: #{tpu_custom_call.1} parent=1 // pred_check
      _
    $region23: #{tpu_custom_call.1} parent=1 // pred_check_branch
      %63 = sbr.rel (0) target = $region25
    $region24: #{tpu_custom_call.1} parent=1 // pred_region
      %64 = dma.done [#allocation6], 128
    $region25: #{tpu_custom_call.1} parent=1 // pred_fallthru
      _
    // Predicated region
    $region26: #{tpu_custom_call.1} parent=1 // pred_check
      _
    $region27: #{tpu_custom_call.1} parent=1 // pred_check_branch
      %66 = sbr.rel (0) target = $region29
    $region28: #{tpu_custom_call.1} parent=1 // pred_region
      %67 = dma.done [#allocation6], 1024
    $region29: #{tpu_custom_call.1} parent=1 // pred_fallthru
      _
    // Predicated region
    $region30: #{tpu_custom_call.1} parent=1 // pred_check
      _
    $region31: #{tpu_custom_call.1} parent=1 // pred_check_branch
      %69 = sbr.rel (0) target = $region33
    $region32: #{tpu_custom_call.1} parent=1 // pred_region
      %70 = dma.done [#allocation9], 1024
    $region33: #{tpu_custom_call.1} parent=1 // pred_fallthru
      _
    %v72 = vld [vmem:[#allocation2] sm:$0xff]
    %v73 = vpack.c.bf16 %v72, %v72
    %v74 = vld [vmem:[#allocation5] sm:$0xf]
    %v75 = vld [vmem:[#allocation5 + $0x4] sm:$0x7]
    %v78 = vunpack.c.l.b16 %v74
    %v79 = vunpack.c.l.b16 %v75
    %v80 = vpack.c.b16 %v79, %v78
    %vm81 = vcmask 105472
    %v83 = vsel %vm81, %v73, 0
    %vm85 = vcmask 1045504
    %vm86 = vcmask 1046528
    %v87 = vsel %vm85, 4294967295, 65535
    %v88 = vsel %vm86, %v87, 0
    %v90 = vand.u32 %v80, %v88
    %92 = vmatprep.subr.bf16.mxu0 0
    %93 = vmatpush1.bf16.msra.mxu0 %v90
    %94 = vmatprep.subr.bf16.mxu0 0
    %95 = vmatpush1.bf16.msra.mxu0 0
    %96 = vmatprep.subr.bf16.mxu0 0
    %97 = vmatpush1.bf16.msra.mxu0 0
    %98 = vmatprep.subr.bf16.mxu0 0
    %99 = vmatpush1.bf16.msra.mxu0 0
    %100 = vmatprep.subr.bf16.mxu0 0
    %101 = vmatpush1.bf16.msra.mxu0 0
    %102 = vmatprep.subr.bf16.mxu0 0
    %103 = vmatpush1.bf16.msra.mxu0 0
    %104 = vmatprep.subr.bf16.mxu0 0
    %105 = vmatpush1.bf16.msra.mxu0 0
    %106 = vmatprep.subr.bf16.mxu0 0
    %107 = vmatpush1.bf16.msra.mxu0 0
    %108 = vmatprep.subr.bf16.mxu0 0
    %109 = vmatpush1.bf16.msra.mxu0 0
    %110 = vmatprep.subr.bf16.mxu0 0
    %111 = vmatpush1.bf16.msra.mxu0 0
    %112 = vmatprep.subr.bf16.mxu0 0
    %113 = vmatpush1.bf16.msra.mxu0 0
    %114 = vmatprep.subr.bf16.mxu0 0
    %115 = vmatpush1.bf16.msra.mxu0 0
    %116 = vmatprep.subr.bf16.mxu0 0
    %117 = vmatpush1.bf16.msra.mxu0 0
    %118 = vmatprep.subr.bf16.mxu0 0
    %119 = vmatpush1.bf16.msra.mxu0 0
    %120 = vmatprep.subr.bf16.mxu0 0
    %121 = vmatpush1.bf16.msra.mxu0 0
    %122 = vmatprep.subr.bf16.mxu0 0
    %123 = vmatpush1.bf16.msra.mxu0 0
    %124 = vmatprep.mubr.bf16.mxu0 0
    %125 = vmatmul.mubr.bf16.gmra.mrb[0].mxu0 %v83
    %v126 = vpop.f32.mrb[0].mxu0
    %v127 = vadd.f32 0.0, %v126
    %v128 = vpop.f32.mrb[0].mxu0
    %v129 = vpop.f32.mrb[0].mxu0
    %v130 = vpop.f32.mrb[0].mxu0
    %131 = vdwg.mxu0
    %v132 = vmax.f32 %v127, 0.0
    %v133 = vpack.c.bf16 %v132, %v132
    %v134 = vld [vmem:[#allocation7] sm:$0xf]
    %v135 = vld [vmem:[#allocation7 + $0x4] sm:$0xf]
    %v136 = vld [vmem:[#allocation7 + $0x8] sm:$0xf]
    %v137 = vld [vmem:[#allocation7 + $0xc] sm:$0xf]
    %v138 = vld [vmem:[#allocation7 + $0x10] sm:$0xf]
    %v139 = vld [vmem:[#allocation7 + $0x14] sm:$0xf]
    %v140 = vld [vmem:[#allocation7 + $0x18] sm:$0xf]
    %v141 = vld [vmem:[#allocation7 + $0x1c] sm:$0xf]
    %v142 = vld [vmem:[#allocation7 + $0x20] sm:$0xf]
    %v143 = vld [vmem:[#allocation7 + $0x24] sm:$0xf]
    %v144 = vld [vmem:[#allocation7 + $0x28] sm:$0xf]
    %v145 = vld [vmem:[#allocation7 + $0x2c] sm:$0xf]
    %v146 = vld [vmem:[#allocation7 + $0x30] sm:$0xf]
    %v147 = vld [vmem:[#allocation7 + $0x34] sm:$0xf]
    %v148 = vld [vmem:[#allocation7 + $0x38] sm:$0xf]
    %v149 = vld [vmem:[#allocation7 + $0x3c] sm:$0xf]
    %v166 = vunpack.c.l.b16 %v134
    %v167 = vunpack.c.l.b16 %v135
    %v168 = vunpack.c.l.b16 %v136
    %v169 = vunpack.c.l.b16 %v137
    %v170 = vunpack.c.l.b16 %v138
    %v171 = vunpack.c.l.b16 %v139
    %v172 = vunpack.c.l.b16 %v140
    %v173 = vunpack.c.l.b16 %v141
    %v174 = vunpack.c.l.b16 %v142
    %v175 = vunpack.c.l.b16 %v143
    %v176 = vunpack.c.l.b16 %v144
    %v177 = vunpack.c.l.b16 %v145
    %v178 = vunpack.c.l.b16 %v146
    %v179 = vunpack.c.l.b16 %v147
    %v180 = vunpack.c.l.b16 %v148
    %v181 = vunpack.c.l.b16 %v149
    %v182 = vpack.c.b16 %v167, %v166
    %v183 = vpack.c.b16 %v169, %v168
    %v184 = vpack.c.b16 %v171, %v170
    %v185 = vpack.c.b16 %v173, %v172
    %v186 = vpack.c.b16 %v175, %v174
    %v187 = vpack.c.b16 %v177, %v176
    %v188 = vpack.c.b16 %v179, %v178
    %v189 = vpack.c.b16 %v181, %v180
    %198 = vmatprep.subr.bf16.mxu0 0
    %199 = vmatpush1.bf16.msra.mxu0 %v182
    %200 = vmatprep.subr.bf16.mxu0 0
    %201 = vmatpush1.bf16.msra.mxu0 %v183
    %202 = vmatprep.subr.bf16.mxu0 0
    %203 = vmatpush1.bf16.msra.mxu0 %v184
    %204 = vmatprep.subr.bf16.mxu0 0
    %205 = vmatpush1.bf16.msra.mxu0 %v185
    %206 = vmatprep.subr.bf16.mxu0 0
    %207 = vmatpush1.bf16.msra.mxu0 %v186
    %208 = vmatprep.subr.bf16.mxu0 0
    %209 = vmatpush1.bf16.msra.mxu0 %v187
    %210 = vmatprep.subr.bf16.mxu0 0
    %211 = vmatpush1.bf16.msra.mxu0 %v188
    %212 = vmatprep.subr.bf16.mxu0 0
    %213 = vmatpush1.bf16.msra.mxu0 %v189
    %214 = vmatprep.subr.bf16.mxu0 0
    %215 = vmatpush1.bf16.msra.mxu0 0
    %216 = vmatprep.subr.bf16.mxu0 0
    %217 = vmatpush1.bf16.msra.mxu0 0
    %218 = vmatprep.subr.bf16.mxu0 0
    %219 = vmatpush1.bf16.msra.mxu0 0
    %220 = vmatprep.subr.bf16.mxu0 0
    %221 = vmatpush1.bf16.msra.mxu0 0
    %222 = vmatprep.subr.bf16.mxu0 0
    %223 = vmatpush1.bf16.msra.mxu0 0
    %224 = vmatprep.subr.bf16.mxu0 0
    %225 = vmatpush1.bf16.msra.mxu0 0
    %226 = vmatprep.subr.bf16.mxu0 0
    %227 = vmatpush1.bf16.msra.mxu0 0
    %228 = vmatprep.subr.bf16.mxu0 0
    %229 = vmatpush1.bf16.msra.mxu0 0
    %230 = vmatprep.mubr.bf16.mxu0 0
    %231 = vmatmul.mubr.bf16.gmra.mrb[0].mxu0 %v133
    %v232 = vpop.f32.mrb[0].mxu0
    %v233 = vadd.f32 0.0, %v232
    %v234 = vpop.f32.mrb[0].mxu0
    %v235 = vpop.f32.mrb[0].mxu0
    %v236 = vpop.f32.mrb[0].mxu0
    %237 = vdwg.mxu0
    %v238 = vmax.f32 %v233, 0.0
    %v239 = vpack.c.bf16 %v238, %v238
    %v240 = vld [vmem:[#allocation8] sm:$0xf]
    %v241 = vld [vmem:[#allocation8 + $0x4] sm:$0xf]
    %v242 = vld [vmem:[#allocation8 + $0x8] sm:$0xf]
    %v243 = vld [vmem:[#allocation8 + $0xc] sm:$0xf]
    %v244 = vld [vmem:[#allocation8 + $0x10] sm:$0xf]
    %v245 = vld [vmem:[#allocation8 + $0x14] sm:$0xf]
    %v246 = vld [vmem:[#allocation8 + $0x18] sm:$0xf]
    %v247 = vld [vmem:[#allocation8 + $0x1c] sm:$0xf]
    %v248 = vld [vmem:[#allocation8 + $0x20] sm:$0xf]
    %v249 = vld [vmem:[#allocation8 + $0x24] sm:$0xf]
    %v250 = vld [vmem:[#allocation8 + $0x28] sm:$0xf]
    %v251 = vld [vmem:[#allocation8 + $0x2c] sm:$0xf]
    %v252 = vld [vmem:[#allocation8 + $0x30] sm:$0xf]
    %v253 = vld [vmem:[#allocation8 + $0x34] sm:$0xf]
    %v254 = vld [vmem:[#allocation8 + $0x38] sm:$0xf]
    %v255 = vld [vmem:[#allocation8 + $0x3c] sm:$0xf]
    %v272 = vunpack.c.l.b16 %v240
    %v273 = vunpack.c.l.b16 %v241
    %v274 = vunpack.c.l.b16 %v242
    %v275 = vunpack.c.l.b16 %v243
    %v276 = vunpack.c.l.b16 %v244
    %v277 = vunpack.c.l.b16 %v245
    %v278 = vunpack.c.l.b16 %v246
    %v279 = vunpack.c.l.b16 %v247
    %v280 = vunpack.c.l.b16 %v248
    %v281 = vunpack.c.l.b16 %v249
    %v282 = vunpack.c.l.b16 %v250
    %v283 = vunpack.c.l.b16 %v251
    %v284 = vunpack.c.l.b16 %v252
    %v285 = vunpack.c.l.b16 %v253
    %v286 = vunpack.c.l.b16 %v254
    %v287 = vunpack.c.l.b16 %v255
    %v288 = vpack.c.b16 %v273, %v272
    %v289 = vpack.c.b16 %v275, %v274
    %v290 = vpack.c.b16 %v277, %v276
    %v291 = vpack.c.b16 %v279, %v278
    %v292 = vpack.c.b16 %v281, %v280
    %v293 = vpack.c.b16 %v283, %v282
    %v294 = vpack.c.b16 %v285, %v284
    %v295 = vpack.c.b16 %v287, %v286
    %304 = vmatprep.subr.bf16.mxu0 0
    %305 = vmatpush1.bf16.msra.mxu0 %v288
    %306 = vmatprep.subr.bf16.mxu0 0
    %307 = vmatpush1.bf16.msra.mxu0 %v289
    %308 = vmatprep.subr.bf16.mxu0 0
    %309 = vmatpush1.bf16.msra.mxu0 %v290
    %310 = vmatprep.subr.bf16.mxu0 0
    %311 = vmatpush1.bf16.msra.mxu0 %v291
    %312 = vmatprep.subr.bf16.mxu0 0
    %313 = vmatpush1.bf16.msra.mxu0 %v292
    %314 = vmatprep.subr.bf16.mxu0 0
    %315 = vmatpush1.bf16.msra.mxu0 %v293
    %316 = vmatprep.subr.bf16.mxu0 0
    %317 = vmatpush1.bf16.msra.mxu0 %v294
    %318 = vmatprep.subr.bf16.mxu0 0
    %319 = vmatpush1.bf16.msra.mxu0 %v295
    %320 = vmatprep.subr.bf16.mxu0 0
    %321 = vmatpush1.bf16.msra.mxu0 0
    %322 = vmatprep.subr.bf16.mxu0 0
    %323 = vmatpush1.bf16.msra.mxu0 0
    %324 = vmatprep.subr.bf16.mxu0 0
    %325 = vmatpush1.bf16.msra.mxu0 0
    %326 = vmatprep.subr.bf16.mxu0 0
    %327 = vmatpush1.bf16.msra.mxu0 0
    %328 = vmatprep.subr.bf16.mxu0 0
    %329 = vmatpush1.bf16.msra.mxu0 0
    %330 = vmatprep.subr.bf16.mxu0 0
    %331 = vmatpush1.bf16.msra.mxu0 0
    %332 = vmatprep.subr.bf16.mxu0 0
    %333 = vmatpush1.bf16.msra.mxu0 0
    %334 = vmatprep.subr.bf16.mxu0 0
    %335 = vmatpush1.bf16.msra.mxu0 0
    %336 = vmatprep.mubr.bf16.mxu0 0
    %337 = vmatmul.mubr.bf16.gmra.mrb[0].mxu0 %v239
    %v338 = vpop.f32.mrb[0].mxu0
    %v339 = vadd.f32 0.0, %v338
    %v340 = vpop.f32.mrb[0].mxu0
    %v341 = vpop.f32.mrb[0].mxu0
    %v342 = vpop.f32.mrb[0].mxu0
    %343 = vdwg.mxu0
    %v344 = vsub.f32 0.0, %v339
    %v345 = vmul.f32 %v344, 1.442695
    %v346 = vpow.pop %v345
    %v347 = vadd.f32 %v346, 1.0
    %v348 = vrcp.pop %v347
    %v349 = vmul.f32 %v348, 5.0
    %v350 = vadd.f32 %v349, 0.0
    %351 = vst [vmem:[#allocation10] sm:$0xff] %v350
    // Predicated region
    $region34: #{tpu_custom_call.1} parent=1 // pred_check
      _
    $region35: #{tpu_custom_call.1} parent=1 // pred_check_branch
      %353 = sbr.rel (0) target = $region37
    $region36: #{tpu_custom_call.1} parent=1 // pred_region
      %s355 = ssub.s32 128, 128
      %356 = vsyncadd [#allocation4], %s355
      %s358 = sshll.u32 [#allocation10], 4
      %s359 = int_to_ptr.vmem [resolvable:$true] %s358
      %361 = dma.vmem_to_hbm [thread:$0]  %s359, 128, %s4, [#allocation4]
    $region37: #{tpu_custom_call.1} parent=1 // pred_fallthru
      _
    // Predicated region
    $region38: #{tpu_custom_call.1} parent=1 // pred_check
      _
    $region39: #{tpu_custom_call.1} parent=1 // pred_check_branch
      %363 = sbr.rel (0) target = $region41
    $region40: #{tpu_custom_call.1} parent=1 // pred_region
      %364 = dma.done [#allocation4], 128
    $region41: #{tpu_custom_call.1} parent=1 // pred_fallthru
      _
    %365 = vsyncpa [#allocation3], 1
    %366 = vsyncpa [#allocation6], 1
    %367 = vsyncpa [#allocation9], 1
    %368 = vsyncpa [#allocation4], 1

// kernel: tpu_custom_call.1
$region0: #{tpu_custom_call.1}
  #allocation0 [shape = 'u32[]', space=smem, size = 0x4, offset = 0x4, fixed_abs, tag = 'smem constant byte address 0x4 - core index']
  #allocation1 [shape = 'u32[144,128]{1,0:T(1,128)}', space=vmem, size = 0x12000, scoped, tag = 'internal scratch']
  %s0 = inlined_call_operand.hbm [shape: f32[8,13], index: 0, kind: input, shape index: {}]
  %s1 = inlined_call_operand.hbm [shape: bf16[13,128], index: 1, kind: input, shape index: {}]
  %s2 = inlined_call_operand.hbm [shape: bf16[128,128], index: 2, kind: input, shape index: {}]
  %s3 = inlined_call_operand.hbm [shape: bf16[128,128], index: 3, kind: input, shape index: {}]
  %s4 = inlined_call_operand.hbm [shape: f32[8,128], index: 4, kind: output, shape index: {}]
  %s5 = sld [smem:[#allocation0]]
  $region42: #{tpu_custom_call.1} parent=0
    _
  %s7 = ssub.s32 1, %s5
  %s8 = scalar_select 0, %s7, %s5
  $region1: #{tpu_custom_call.1} parent=0
    #allocation2 [shape = 'u8[4096]{0}', space=vmem, size = 0x1000, scoped, tag = 'input window, operand 0, single buffered']
    #allocation3 [shape = 's32[1]{0}', space=sflag, size = 0x4, scoped, tag = 'scoped memory for tpu_custom_call.1']
    #allocation4 [shape = 's32[1]{0}', space=sflag, size = 0x4, scoped, tag = 'scoped memory for tpu_custom_call.1']
    #allocation5 [shape = 'u8[4096]{0}', space=vmem, size = 0x1000, scoped, tag = 'input window, operand 1, single buffered']
    #allocation6 [shape = 's32[1]{0}', space=sflag, size = 0x4, scoped, tag = 'scoped memory for tpu_custom_call.1']
    #allocation7 [shape = 'u8[32768]{0}', space=vmem, size = 0x8000, scoped, tag = 'input window, operand 2, single buffered']
    #allocation8 [shape = 'u8[32768]{0}', space=vmem, size = 0x8000, scoped, tag = 'input window, operand 3, single buffered']
    #allocation9 [shape = 's32[1]{0}', space=sflag, size = 0x4, scoped, tag = 'scoped memory for tpu_custom_call.1']
    #allocation10 [shape = 'u8[4096]{0}', space=vmem, size = 0x1000, scoped, tag = 'output window, operand 0, single buffered']
    %9 = vsyncpa [#allocation3], 0
    %10 = vsyncpa [#allocation6], 0
    %11 = vsyncpa [#allocation9], 0
    %12 = vsyncpa [#allocation4], 0
    // Predicated region
    $region2: #{tpu_custom_call.1} parent=1 // pred_check
      _
    $region3: #{tpu_custom_call.1} parent=1 // pred_check_branch
      %14 = sbr.rel (0) target = $region5
    $region4: #{tpu_custom_call.1} parent=1 // pred_region
      %s16 = ssub.s32 128, 128
      %17 = vsyncadd [#allocation3], %s16
      %s19 = sshll.u32 [#allocation2], 4
      %s20 = int_to_ptr.vmem [resolvable:$true] %s19
      %22 = dma.hbm_to_vmem [thread:$0]  %s0, 128, %s20, [#allocation3]
    $region5: #{tpu_custom_call.1} parent=1 // pred_fallthru
      _
    // Predicated region
    $region6: #{tpu_custom_call.1} parent=1 // pred_check
      _
    $region7: #{tpu_custom_call.1} parent=1 // pred_check_branch
      %24 = sbr.rel (0) target = $region9
    $region8: #{tpu_custom_call.1} parent=1 // pred_region
      %s26 = ssub.s32 128, 128
      %27 = vsyncadd [#allocation6], %s26
      %s28 = sshll.u32 [#allocation5], 4
      %s29 = int_to_ptr.vmem [resolvable:$true] %s28
      %34 = dma.hbm_to_vmem [thread:$0]  %s1, 128, %s29, [#allocation6], 64, 64, 4
    $region9: #{tpu_custom_call.1} parent=1 // pred_fallthru
      _
    // Predicated region
    $region10: #{tpu_custom_call.1} parent=1 // pred_check
      _
    $region11: #{tpu_custom_call.1} parent=1 // pred_check_branch
      %36 = sbr.rel (0) target = $region13
    $region12: #{tpu_custom_call.1} parent=1 // pred_region
      %s38 = ssub.s32 1024, 1024
      %39 = vsyncadd [#allocation6], %s38
      %s40 = sshll.u32 [#allocation7], 4
      %s41 = int_to_ptr.vmem [resolvable:$true] %s40
      %46 = dma.hbm_to_vmem [thread:$0]  %s2, 1024, %s41, [#allocation6], 64, 64, 4
    $region13: #{tpu_custom_call.1} parent=1 // pred_fallthru
      _
    // Predicated region
    $region14: #{tpu_custom_call.1} parent=1 // pred_check
      _
    $region15: #{tpu_custom_call.1} parent=1 // pred_check_branch
      %48 = sbr.rel (0) target = $region17
    $region16: #{tpu_custom_call.1} parent=1 // pred_region
      %s50 = ssub.s32 1024, 1024
      %51 = vsyncadd [#allocation9], %s50
      %s52 = sshll.u32 [#allocation8], 4
      %s53 = int_to_ptr.vmem [resolvable:$true] %s52
      %58 = dma.hbm_to_vmem [thread:$0]  %s3, 1024, %s53, [#allocation9], 64, 64, 4
    $region17: #{tpu_custom_call.1} parent=1 // pred_fallthru
      _
    // Predicated region
    $region18: #{tpu_custom_call.1} parent=1 // pred_check
      _
    $region19: #{tpu_custom_call.1} parent=1 // pred_check_branch
      %60 = sbr.rel (0) target = $region21
    $region20: #{tpu_custom_call.1} parent=1 // pred_region
      %61 = dma.done [#allocation3], 128
    $region21: #{tpu_custom_call.1} parent=1 // pred_fallthru
      _
    // Predicated region
    $region22: #{tpu_custom_call.1} parent=1 // pred_check
      _
    $region23: #{tpu_custom_call.1} parent=1 // pred_check_branch
      %63 = sbr.rel (0) target = $region25
    $region24: #{tpu_custom_call.1} parent=1 // pred_region
      %64 = dma.done [#allocation6], 128
    $region25: #{tpu_custom_call.1} parent=1 // pred_fallthru
      _
    // Predicated region
    $region26: #{tpu_custom_call.1} parent=1 // pred_check
      _
    $region27: #{tpu_custom_call.1} parent=1 // pred_check_branch
      %66 = sbr.rel (0) target = $region29
    $region28: #{tpu_custom_call.1} parent=1 // pred_region
      %67 = dma.done [#allocation6], 1024
    $region29: #{tpu_custom_call.1} parent=1 // pred_fallthru
      _
    // Predicated region
    $region30: #{tpu_custom_call.1} parent=1 // pred_check
      _
    $region31: #{tpu_custom_call.1} parent=1 // pred_check_branch
      %69 = sbr.rel (0) target = $region33
    $region32: #{tpu_custom_call.1} parent=1 // pred_region
      %70 = dma.done [#allocation9], 1024
    $region33: #{tpu_custom_call.1} parent=1 // pred_fallthru
      _
    %v72 = vld [vmem:[#allocation2] sm:$0xff]
    %v73 = vpack.c.bf16 %v72, %v72
    %v74 = vld [vmem:[#allocation5] sm:$0xf]
    %v75 = vld [vmem:[#allocation5 + $0x4] sm:$0x7]
    %v78 = vunpack.c.l.b16 %v74
    %v79 = vunpack.c.l.b16 %v75
    %v80 = vpack.c.b16 %v79, %v78
    %vm81 = vcmask 105472
    %v83 = vsel %vm81, %v73, 0
    %vm85 = vcmask 1045504
    %vm86 = vcmask 1046528
    %v87 = vsel %vm85, 4294967295, 65535
    %v88 = vsel %vm86, %v87, 0
    %v90 = vand.u32 %v80, %v88
    %92 = vmatprep.subr.bf16.mxu0 0
    %93 = vmatpush1.bf16.msra.mxu0 %v90
    %94 = vmatprep.subr.bf16.mxu0 0
    %95 = vmatpush1.bf16.msra.mxu0 0
    %96 = vmatprep.subr.bf16.mxu0 0
    %97 = vmatpush1.bf16.msra.mxu0 0
    %98 = vmatprep.subr.bf16.mxu0 0
    %99 = vmatpush1.bf16.msra.mxu0 0
    %100 = vmatprep.subr.bf16.mxu0 0
    %101 = vmatpush1.bf16.msra.mxu0 0
    %102 = vmatprep.subr.bf16.mxu0 0
    %103 = vmatpush1.bf16.msra.mxu0 0
    %104 = vmatprep.subr.bf16.mxu0 0
    %105 = vmatpush1.bf16.msra.mxu0 0
    %106 = vmatprep.subr.bf16.mxu0 0
    %107 = vmatpush1.bf16.msra.mxu0 0
    %108 = vmatprep.subr.bf16.mxu0 0
    %109 = vmatpush1.bf16.msra.mxu0 0
    %110 = vmatprep.subr.bf16.mxu0 0
    %111 = vmatpush1.bf16.msra.mxu0 0
    %112 = vmatprep.subr.bf16.mxu0 0
    %113 = vmatpush1.bf16.msra.mxu0 0
    %114 = vmatprep.subr.bf16.mxu0 0
    %115 = vmatpush1.bf16.msra.mxu0 0
    %116 = vmatprep.subr.bf16.mxu0 0
    %117 = vmatpush1.bf16.msra.mxu0 0
    %118 = vmatprep.subr.bf16.mxu0 0
    %119 = vmatpush1.bf16.msra.mxu0 0
    %120 = vmatprep.subr.bf16.mxu0 0
    %121 = vmatpush1.bf16.msra.mxu0 0
    %122 = vmatprep.subr.bf16.mxu0 0
    %123 = vmatpush1.bf16.msra.mxu0 0
    %124 = vmatprep.mubr.bf16.mxu0 0
    %125 = vmatmul.mubr.bf16.gmra.mrb[0].mxu0 %v83
    %v126 = vpop.f32.mrb[0].mxu0
    %v127 = vadd.f32 0.0, %v126
    %v128 = vpop.f32.mrb[0].mxu0
    %v129 = vpop.f32.mrb[0].mxu0
    %v130 = vpop.f32.mrb[0].mxu0
    %131 = vdwg.mxu0
    %v132 = vmax.f32 %v127, 0.0
    %v133 = vpack.c.bf16 %v132, %v132
    %v134 = vld [vmem:[#allocation7] sm:$0xf]
    %v135 = vld [vmem:[#allocation7 + $0x4] sm:$0xf]
    %v136 = vld [vmem:[#allocation7 + $0x8] sm:$0xf]
    %v137 = vld [vmem:[#allocation7 + $0xc] sm:$0xf]
    %v138 = vld [vmem:[#allocation7 + $0x10] sm:$0xf]
    %v139 = vld [vmem:[#allocation7 + $0x14] sm:$0xf]
    %v140 = vld [vmem:[#allocation7 + $0x18] sm:$0xf]
    %v141 = vld [vmem:[#allocation7 + $0x1c] sm:$0xf]
    %v142 = vld [vmem:[#allocation7 + $0x20] sm:$0xf]
    %v143 = vld [vmem:[#allocation7 + $0x24] sm:$0xf]
    %v144 = vld [vmem:[#allocation7 + $0x28] sm:$0xf]
    %v145 = vld [vmem:[#allocation7 + $0x2c] sm:$0xf]
    %v146 = vld [vmem:[#allocation7 + $0x30] sm:$0xf]
    %v147 = vld [vmem:[#allocation7 + $0x34] sm:$0xf]
    %v148 = vld [vmem:[#allocation7 + $0x38] sm:$0xf]
    %v149 = vld [vmem:[#allocation7 + $0x3c] sm:$0xf]
    %v166 = vunpack.c.l.b16 %v134
    %v167 = vunpack.c.l.b16 %v135
    %v168 = vunpack.c.l.b16 %v136
    %v169 = vunpack.c.l.b16 %v137
    %v170 = vunpack.c.l.b16 %v138
    %v171 = vunpack.c.l.b16 %v139
    %v172 = vunpack.c.l.b16 %v140
    %v173 = vunpack.c.l.b16 %v141
    %v174 = vunpack.c.l.b16 %v142
    %v175 = vunpack.c.l.b16 %v143
    %v176 = vunpack.c.l.b16 %v144
    %v177 = vunpack.c.l.b16 %v145
    %v178 = vunpack.c.l.b16 %v146
    %v179 = vunpack.c.l.b16 %v147
    %v180 = vunpack.c.l.b16 %v148
    %v181 = vunpack.c.l.b16 %v149
    %v182 = vpack.c.b16 %v167, %v166
    %v183 = vpack.c.b16 %v169, %v168
    %v184 = vpack.c.b16 %v171, %v170
    %v185 = vpack.c.b16 %v173, %v172
    %v186 = vpack.c.b16 %v175, %v174
    %v187 = vpack.c.b16 %v177, %v176
    %v188 = vpack.c.b16 %v179, %v178
    %v189 = vpack.c.b16 %v181, %v180
    %198 = vmatprep.subr.bf16.mxu0 0
    %199 = vmatpush1.bf16.msra.mxu0 %v182
    %200 = vmatprep.subr.bf16.mxu0 0
    %201 = vmatpush1.bf16.msra.mxu0 %v183
    %202 = vmatprep.subr.bf16.mxu0 0
    %203 = vmatpush1.bf16.msra.mxu0 %v184
    %204 = vmatprep.subr.bf16.mxu0 0
    %205 = vmatpush1.bf16.msra.mxu0 %v185
    %206 = vmatprep.subr.bf16.mxu0 0
    %207 = vmatpush1.bf16.msra.mxu0 %v186
    %208 = vmatprep.subr.bf16.mxu0 0
    %209 = vmatpush1.bf16.msra.mxu0 %v187
    %210 = vmatprep.subr.bf16.mxu0 0
    %211 = vmatpush1.bf16.msra.mxu0 %v188
    %212 = vmatprep.subr.bf16.mxu0 0
    %213 = vmatpush1.bf16.msra.mxu0 %v189
    %214 = vmatprep.subr.bf16.mxu0 0
    %215 = vmatpush1.bf16.msra.mxu0 0
    %216 = vmatprep.subr.bf16.mxu0 0
    %217 = vmatpush1.bf16.msra.mxu0 0
    %218 = vmatprep.subr.bf16.mxu0 0
    %219 = vmatpush1.bf16.msra.mxu0 0
    %220 = vmatprep.subr.bf16.mxu0 0
    %221 = vmatpush1.bf16.msra.mxu0 0
    %222 = vmatprep.subr.bf16.mxu0 0
    %223 = vmatpush1.bf16.msra.mxu0 0
    %224 = vmatprep.subr.bf16.mxu0 0
    %225 = vmatpush1.bf16.msra.mxu0 0
    %226 = vmatprep.subr.bf16.mxu0 0
    %227 = vmatpush1.bf16.msra.mxu0 0
    %228 = vmatprep.subr.bf16.mxu0 0
    %229 = vmatpush1.bf16.msra.mxu0 0
    %230 = vmatprep.mubr.bf16.mxu0 0
    %231 = vmatmul.mubr.bf16.gmra.mrb[0].mxu0 %v133
    %v232 = vpop.f32.mrb[0].mxu0
    %v233 = vadd.f32 0.0, %v232
    %v234 = vpop.f32.mrb[0].mxu0
    %v235 = vpop.f32.mrb[0].mxu0
    %v236 = vpop.f32.mrb[0].mxu0
    %237 = vdwg.mxu0
    %v238 = vmax.f32 %v233, 0.0
    %v239 = vpack.c.bf16 %v238, %v238
    %v240 = vld [vmem:[#allocation8] sm:$0xf]
    %v241 = vld [vmem:[#allocation8 + $0x4] sm:$0xf]
    %v242 = vld [vmem:[#allocation8 + $0x8] sm:$0xf]
    %v243 = vld [vmem:[#allocation8 + $0xc] sm:$0xf]
    %v244 = vld [vmem:[#allocation8 + $0x10] sm:$0xf]
    %v245 = vld [vmem:[#allocation8 + $0x14] sm:$0xf]
    %v246 = vld [vmem:[#allocation8 + $0x18] sm:$0xf]
    %v247 = vld [vmem:[#allocation8 + $0x1c] sm:$0xf]
    %v248 = vld [vmem:[#allocation8 + $0x20] sm:$0xf]
    %v249 = vld [vmem:[#allocation8 + $0x24] sm:$0xf]
    %v250 = vld [vmem:[#allocation8 + $0x28] sm:$0xf]
    %v251 = vld [vmem:[#allocation8 + $0x2c] sm:$0xf]
    %v252 = vld [vmem:[#allocation8 + $0x30] sm:$0xf]
    %v253 = vld [vmem:[#allocation8 + $0x34] sm:$0xf]
    %v254 = vld [vmem:[#allocation8 + $0x38] sm:$0xf]
    %v255 = vld [vmem:[#allocation8 + $0x3c] sm:$0xf]
    %v272 = vunpack.c.l.b16 %v240
    %v273 = vunpack.c.l.b16 %v241
    %v274 = vunpack.c.l.b16 %v242
    %v275 = vunpack.c.l.b16 %v243
    %v276 = vunpack.c.l.b16 %v244
    %v277 = vunpack.c.l.b16 %v245
    %v278 = vunpack.c.l.b16 %v246
    %v279 = vunpack.c.l.b16 %v247
    %v280 = vunpack.c.l.b16 %v248
    %v281 = vunpack.c.l.b16 %v249
    %v282 = vunpack.c.l.b16 %v250
    %v283 = vunpack.c.l.b16 %v251
    %v284 = vunpack.c.l.b16 %v252
    %v285 = vunpack.c.l.b16 %v253
    %v286 = vunpack.c.l.b16 %v254
    %v287 = vunpack.c.l.b16 %v255
    %v288 = vpack.c.b16 %v273, %v272
    %v289 = vpack.c.b16 %v275, %v274
    %v290 = vpack.c.b16 %v277, %v276
    %v291 = vpack.c.b16 %v279, %v278
    %v292 = vpack.c.b16 %v281, %v280
    %v293 = vpack.c.b16 %v283, %v282
    %v294 = vpack.c.b16 %v285, %v284
    %v295 = vpack.c.b16 %v287, %v286
    %304 = vmatprep.subr.bf16.mxu0 0
    %305 = vmatpush1.bf16.msra.mxu0 %v288
    %306 = vmatprep.subr.bf16.mxu0 0
    %307 = vmatpush1.bf16.msra.mxu0 %v289
    %308 = vmatprep.subr.bf16.mxu0 0
    %309 = vmatpush1.bf16.msra.mxu0 %v290
    %310 = vmatprep.subr.bf16.mxu0 0
    %311 = vmatpush1.bf16.msra.mxu0 %v291
    %312 = vmatprep.subr.bf16.mxu0 0
    %313 = vmatpush1.bf16.msra.mxu0 %v292
    %314 = vmatprep.subr.bf16.mxu0 0
    %315 = vmatpush1.bf16.msra.mxu0 %v293
    %316 = vmatprep.subr.bf16.mxu0 0
    %317 = vmatpush1.bf16.msra.mxu0 %v294
    %318 = vmatprep.subr.bf16.mxu0 0
    %319 = vmatpush1.bf16.msra.mxu0 %v295
    %320 = vmatprep.subr.bf16.mxu0 0
    %321 = vmatpush1.bf16.msra.mxu0 0
    %322 = vmatprep.subr.bf16.mxu0 0
    %323 = vmatpush1.bf16.msra.mxu0 0
    %324 = vmatprep.subr.bf16.mxu0 0
    %325 = vmatpush1.bf16.msra.mxu0 0
    %326 = vmatprep.subr.bf16.mxu0 0
    %327 = vmatpush1.bf16.msra.mxu0 0
    %328 = vmatprep.subr.bf16.mxu0 0
    %329 = vmatpush1.bf16.msra.mxu0 0
    %330 = vmatprep.subr.bf16.mxu0 0
    %331 = vmatpush1.bf16.msra.mxu0 0
    %332 = vmatprep.subr.bf16.mxu0 0
    %333 = vmatpush1.bf16.msra.mxu0 0
    %334 = vmatprep.subr.bf16.mxu0 0
    %335 = vmatpush1.bf16.msra.mxu0 0
    %336 = vmatprep.mubr.bf16.mxu0 0
    %337 = vmatmul.mubr.bf16.gmra.mrb[0].mxu0 %v239
    %v338 = vpop.f32.mrb[0].mxu0
    %v339 = vadd.f32 0.0, %v338
    %v340 = vpop.f32.mrb[0].mxu0
    %v341 = vpop.f32.mrb[0].mxu0
    %v342 = vpop.f32.mrb[0].mxu0
    %343 = vdwg.mxu0
    %v344 = vsub.f32 0.0, %v339
    %v345 = vmul.f32 %v344, 1.442695
    %v346 = vpow.pop %v345
    %v347 = vadd.f32 %v346, 1.0
    %v348 = vrcp.pop %v347
    %v349 = vmul.f32 %v348, 5.0
    %v350 = vadd.f32 %v349, 0.0
    %351 = vst [vmem:[#allocation10] sm:$0xff] %v350
    // Predicated region
    $region34: #{tpu_custom_call.1} parent=1 // pred_check
      _
    $region35: #{tpu_custom_call.1} parent=1 // pred_check_branch
      %353 = sbr.rel (0) target = $region37
    $region36: #{tpu_custom_call.1} parent=1 // pred_region
      %s355 = ssub.s32 128, 128
      %356 = vsyncadd [#allocation4], %s355
      %s358 = sshll.u32 [#allocation10], 4
      %s359 = int_to_ptr.vmem [resolvable:$true] %s358
      %361 = dma.vmem_to_hbm [thread:$0]  %s359, 128, %s4, [#allocation4]
    $region37: #{tpu_custom_call.1} parent=1 // pred_fallthru
      _
    // Predicated region
    $region38: #{tpu_custom_call.1} parent=1 // pred_check
      _
    $region39: #{tpu_custom_call.1} parent=1 // pred_check_branch
      %363 = sbr.rel (0) target = $region41
    $region40: #{tpu_custom_call.1} parent=1 // pred_region
      %364 = dma.done [#allocation4], 128
    $region41: #{tpu_custom_call.1} parent=1 // pred_fallthru
      _
    %365 = vsyncpa [#allocation3], 1
    %366 = vsyncpa [#allocation6], 1
    %367 = vsyncpa [#allocation9], 1
    %368 = vsyncpa [#allocation4], 1

</llo_original>
